<compile_context>
chip_gen: v7x
topology: tpu7x:2x2x1
jax: 0.10.0
libtpu: 0.0.40
codegen_flags: <defaults>
</compile_context>

<pallas_src>
import functools

import jax
import jax.numpy as jnp
import numpy as np
from jax.experimental import pallas as pl
from jax.experimental.pallas import tpu as pltpu


# ---------------------------------------------------------------------------
# Kernel
# ---------------------------------------------------------------------------
def _attention_kernel(*refs, inv_temperature, has_bias, has_mask, return_attn):
    it = iter(refs)
    q_ref = next(it)                              # (1, TQ, Dk)
    k_ref = next(it)                              # (1, Lk, Dk)
    v_ref = next(it)                              # (1, Lk, Dv)
    bias_ref = next(it) if has_bias else None     # (1, TQ, Lk) f32
    mask_ref = next(it) if has_mask else None     # (1, TQ, Lk) int8
    out_ref = next(it)                            # (1, TQ, Dv)
    attn_ref = next(it) if return_attn else None  # (1, TQ, Lk)

    q = q_ref[0]        # (TQ, Dk)
    k = k_ref[0]        # (Lk, Dk)
    v = v_ref[0]        # (Lk, Dv)

    # scores = q @ k^T  (MXU, f32 accumulation; bf16 inputs stay bf16 on MXU)
    scores = jax.lax.dot_general(
        q, k, (((1,), (1,)), ((), ())), preferred_element_type=jnp.float32)
    if has_bias:
        scores = scores + bias_ref[0]
    scores = scores * inv_temperature             # constant multiply, no divide

    if has_mask:
        masked = mask_ref[0] != 0
        scores = jnp.where(masked, -jnp.inf, scores)

    # softmax over the key axis
    m = jnp.max(scores, axis=-1, keepdims=True)
    ex = jnp.exp(scores - m)
    denom = jnp.sum(ex, axis=-1, keepdims=True)
    inv = pl.reciprocal(denom, approx=True)       # EUP slot, (TQ, 1) only
    inv = inv * (2.0 - denom * inv)               # one Newton step -> ~f32 exact
    attn = ex * inv                               # mul instead of (TQ,Lk) divide

    if has_mask:
        # Matches PyTorch: fully-masked rows come out as 0, not NaN.
        attn = jnp.where(masked, 0.0, attn)

    # TODO(synk): nn.Dropout(0.1) is identity in eval mode; training-mode
    # dropout (random mask + 1/(1-p) scaling) is not applied here.

    if return_attn:
        attn_ref[0] = attn.astype(attn_ref.dtype)

    out_ref[0] = jax.lax.dot_general(
        attn.astype(v.dtype), v, (((1,), (0,)), ((), ())),
        preferred_element_type=jnp.float32).astype(out_ref.dtype)


# ---------------------------------------------------------------------------
# Helpers
# ---------------------------------------------------------------------------
def _relative_shift(s):
    """Exact F.pad(s, (1, 0)).view(-1, Lq+1, Lq)[:, 1:, :] (pure re-indexing)."""
    B, Lq, Le = s.shape
    assert Le == Lq, "relative shift requires a square score matrix"
    p = jnp.pad(s, ((0, 0), (0, 0), (1, 0)))      # (B, Lq, Lq+1)
    p = p.reshape(B, Lq + 1, Lq)
    return p[:, 1:, :]                             # (B, Lq, Lq)


def _pick_block_q(Lq, target=256):
    """Largest MXU/layout-friendly Lq tile (multiple of 32) that divides Lq."""
    if Lq <= target:
        return Lq
    for t in (256, 128, 64, 32):
        if t <= target and Lq % t == 0:
            return t
    return Lq  # no nice divisor: fall back to one tile per batch element


def _vmem_limit_bytes(block_bytes):
    """Raise the scoped-VMEM limit only when the tiles actually need it."""
    need = 2 * block_bytes + (4 << 20)            # double-buffering + headroom
    if need <= (32 << 20):
        return None                               # default scoped limit is fine
    return int(min(need, 96 << 20))


# ---------------------------------------------------------------------------
# Wrapper
# ---------------------------------------------------------------------------
def scaled_dot_product_attention(q, k, v, e=None, mask=None, *, temperature,
                                 return_attn=True, block_q=None):
    B, Lq, Dk = q.shape
    _, Lk, _ = k.shape
    _, _, Dv = v.shape

    TQ = _pick_block_q(Lq) if block_q is None else block_q
    assert Lq % TQ == 0, "block_q must divide Lq"
    num_q = Lq // TQ
    itemsize = jnp.dtype(q.dtype).itemsize

    inputs = [q, k, v]
    in_specs = [
        pl.BlockSpec((1, TQ, Dk), lambda b, i: (b, i, 0)),
        pl.BlockSpec((1, Lk, Dk), lambda b, i: (b, 0, 0)),   # resident per batch
        pl.BlockSpec((1, Lk, Dv), lambda b, i: (b, 0, 0)),   # resident per batch
    ]
    block_bytes = TQ * Dk * itemsize + Lk * Dk * itemsize + Lk * Dv * itemsize

    has_bias = e is not None
    if has_bias:
        assert Lk == Lq, "relative-position term requires Lk == Lq"
        # s = q @ e^T and the exact pad/view skew stay in XLA: the skew mixes
        # adjacent rows of s, so it does not tile over Lq inside the kernel.
        s = jnp.einsum("bqd,bkd->bqk", q, e, preferred_element_type=jnp.float32)
        bias = _relative_shift(s)                            # (B, Lq, Lk) f32
        inputs.append(bias)
        in_specs.append(pl.BlockSpec((1, TQ, Lk), lambda b, i: (b, i, 0)))
        block_bytes += TQ * Lk * 4

    has_mask = mask is not None
    if has_mask:
        mask_i8 = jnp.broadcast_to(mask, (B, Lq, Lk)).astype(jnp.int8)
        inputs.append(mask_i8)
        in_specs.append(pl.BlockSpec((1, TQ, Lk), lambda b, i: (b, i, 0)))
        block_bytes += TQ * Lk

    out_shapes = [jax.ShapeDtypeStruct((B, Lq, Dv), q.dtype)]
    out_specs = [pl.BlockSpec((1, TQ, Dv), lambda b, i: (b, i, 0))]
    block_bytes += TQ * Dv * itemsize
    if return_attn:
        out_shapes.append(jax.ShapeDtypeStruct((B, Lq, Lk), q.dtype))
        out_specs.append(pl.BlockSpec((1, TQ, Lk), lambda b, i: (b, i, 0)))
        block_bytes += TQ * Lk * itemsize

    kernel = functools.partial(
        _attention_kernel,
        inv_temperature=float(1.0 / float(temperature)),
        has_bias=has_bias, has_mask=has_mask, return_attn=return_attn)

    results = pl.pallas_call(
        kernel,
        out_shape=tuple(out_shapes),
        grid=(B, num_q),
        in_specs=in_specs,
        out_specs=tuple(out_specs),
        compiler_params=pltpu.CompilerParams(
            dimension_semantics=("parallel", "parallel"),
            vmem_limit_bytes=_vmem_limit_bytes(block_bytes)),
    )(*inputs)

    if return_attn:
        return results[0], results[1]
    return results[0], None


# ---------------------------------------------------------------------------
# Pure-JAX reference (mirrors the PyTorch forward, eval-mode dropout)
# ---------------------------------------------------------------------------
def _reference(q, k, v, e, mask, temperature):
    attn = jnp.einsum("bqd,bkd->bqk", q, k, preferred_element_type=jnp.float32)
    if e is not None:
        s = jnp.einsum("bqd,bkd->bqk", q, e, preferred_element_type=jnp.float32)
        attn = attn + _relative_shift(s)
    attn = attn / temperature
    if mask is not None:
        attn = jnp.where(mask, -jnp.inf, attn)
    attn = jax.nn.softmax(attn, axis=2)
    if mask is not None:
        attn = jnp.where(mask, 0.0, attn)
    out = jnp.einsum("bqk,bkd->bqd", attn, v, preferred_element_type=jnp.float32)
    return out.astype(q.dtype), attn.astype(q.dtype)


# ---------------------------------------------------------------------------
if __name__ == "__main__":
    B, L, Dk, Dv = 2, 8, 16, 16
    temperature = float(np.sqrt(Dk))

    key = jax.random.PRNGKey(0)
    kq, kk, kv, ke = jax.random.split(key, 4)
    q = jax.random.normal(kq, (B, L, Dk), dtype=jnp.float32)
    k = jax.random.normal(kk, (B, L, Dk), dtype=jnp.float32)
    v = jax.random.normal(kv, (B, L, Dv), dtype=jnp.float32)
    e = jax.random.normal(ke, (B, L, Dk), dtype=jnp.float32)

    # Causal-style mask (never masks an entire row -> no NaNs in softmax).
    rows = jnp.arange(L)[:, None]
    cols = jnp.arange(L)[None, :]
    mask = jnp.broadcast_to(cols > rows, (B, L, L))

    # 1) Full path: relative bias + mask + attn output, f32.
    out, attn = scaled_dot_product_attention(
        q, k, v, e=e, mask=mask, temperature=temperature)
    out, attn = jax.block_until_ready((out, attn))
    ref_out, ref_attn = _reference(q, k, v, e, mask, temperature)
    np.testing.assert_allclose(np.asarray(out), np.asarray(ref_out),
                               rtol=1e-4, atol=1e-4)
    np.testing.assert_allclose(np.asarray(attn), np.asarray(ref_attn),
                               rtol=1e-4, atol=1e-4)

    # 2) Lean variant: no bias, no mask, no attn writeback.
    out2, attn2 = scaled_dot_product_attention(
        q, k, v, temperature=temperature, return_attn=False)
    out2 = jax.block_until_ready(out2)
    assert attn2 is None
    ref_out2, _ = _reference(q, k, v, None, None, temperature)
    np.testing.assert_allclose(np.asarray(out2), np.asarray(ref_out2),
                               rtol=1e-4, atol=1e-4)

    # 3) bf16 inputs (MXU-friendly), compared against a bf16-input reference.
    qb, kb, vb, eb = (x.astype(jnp.bfloat16) for x in (q, k, v, e))
    out3, attn3 = scaled_dot_product_attention(
        qb, kb, vb, e=eb, mask=mask, temperature=temperature)
    out3, attn3 = jax.block_until_ready((out3, attn3))
    ref_out3, ref_attn3 = _reference(qb, kb, vb, eb, mask, temperature)
    np.testing.assert_allclose(np.asarray(out3.astype(jnp.float32)),
                               np.asarray(ref_out3.astype(jnp.float32)),
                               rtol=3e-2, atol=3e-2)
    np.testing.assert_allclose(np.asarray(attn3.astype(jnp.float32)),
                               np.asarray(ref_attn3.astype(jnp.float32)),
                               rtol=3e-2, atol=3e-2)

    print("KERNEL_OK")
</pallas_src>

<mosaic_0001>
module attributes {stable_mosaic.version = 11 : i64} {
  func.func @_attention_kernel(%arg0: i32, %arg1: i32, %arg2: memref<1x8x16xf32, #tpu.memory_space<vmem>>, %arg3: memref<1x8x16xf32, #tpu.memory_space<vmem>>, %arg4: memref<1x8x16xf32, #tpu.memory_space<vmem>>, %arg5: memref<1x8x8xf32, #tpu.memory_space<vmem>>, %arg6: memref<1x8x8xi8, #tpu.memory_space<vmem>>, %arg7: memref<1x8x16xf32, #tpu.memory_space<vmem>>, %arg8: memref<1x8x8xf32, #tpu.memory_space<vmem>>) attributes {dimension_semantics = [#tpu.dimension_semantics<parallel>, #tpu.dimension_semantics<parallel>], iteration_bounds = array<i64: 2, 1>, scalar_prefetch = 0 : i64, scratch_operands = 0 : i64, tpu.core_type = #tpu.core_type<tc>, window_params = [{transform_indices = @transform_0, window_bounds = array<i64: 1, 8, 16>}, {transform_indices = @transform_1, window_bounds = array<i64: 1, 8, 16>}, {transform_indices = @transform_2, window_bounds = array<i64: 1, 8, 16>}, {transform_indices = @transform_3, window_bounds = array<i64: 1, 8, 8>}, {transform_indices = @transform_4, window_bounds = array<i64: 1, 8, 8>}, {transform_indices = @transform_5, window_bounds = array<i64: 1, 8, 16>}, {transform_indices = @transform_6, window_bounds = array<i64: 1, 8, 8>}]} {
    %c0 = arith.constant 0 : index
    %c0_0 = arith.constant 0 : index
    %c0_1 = arith.constant 0 : index
    %0 = vector.load %arg2[%c0, %c0_0, %c0_1] : memref<1x8x16xf32, #tpu.memory_space<vmem>>, vector<1x8x16xf32>
    %1 = vector.shape_cast %0 : vector<1x8x16xf32> to vector<8x16xf32>
    %c0_2 = arith.constant 0 : index
    %c0_3 = arith.constant 0 : index
    %c0_4 = arith.constant 0 : index
    %2 = vector.load %arg3[%c0_2, %c0_3, %c0_4] : memref<1x8x16xf32, #tpu.memory_space<vmem>>, vector<1x8x16xf32>
    %3 = vector.shape_cast %2 : vector<1x8x16xf32> to vector<8x16xf32>
    %c0_5 = arith.constant 0 : index
    %c0_6 = arith.constant 0 : index
    %c0_7 = arith.constant 0 : index
    %4 = vector.load %arg4[%c0_5, %c0_6, %c0_7] : memref<1x8x16xf32, #tpu.memory_space<vmem>>, vector<1x8x16xf32>
    %5 = vector.shape_cast %4 : vector<1x8x16xf32> to vector<8x16xf32>
    %cst = arith.constant dense<0.000000e+00> : vector<8x8xf32>
    %6 = tpu.matmul %1, %3, %cst {dimension_numbers = #tpu.dot_dimension_numbers<[1], [1], [0], [0], [0, 0, 1, 0], [], []>} : vector<8x16xf32>, vector<8x16xf32>, vector<8x8xf32> -> vector<8x8xf32>
    %c0_8 = arith.constant 0 : index
    %c0_9 = arith.constant 0 : index
    %c0_10 = arith.constant 0 : index
    %7 = vector.load %arg5[%c0_8, %c0_9, %c0_10] : memref<1x8x8xf32, #tpu.memory_space<vmem>>, vector<1x8x8xf32>
    %8 = vector.shape_cast %7 : vector<1x8x8xf32> to vector<8x8xf32>
    %9 = arith.addf %6, %8 : vector<8x8xf32>
    %cst_11 = arith.constant 2.500000e-01 : f32
    %10 = vector.broadcast %cst_11 : f32 to vector<8x8xf32>
    %11 = arith.mulf %9, %10 : vector<8x8xf32>
    %c0_12 = arith.constant 0 : index
    %c0_13 = arith.constant 0 : index
    %c0_14 = arith.constant 0 : index
    %12 = vector.load %arg6[%c0_12, %c0_13, %c0_14] : memref<1x8x8xi8, #tpu.memory_space<vmem>>, vector<1x8x8xi8>
    %13 = vector.shape_cast %12 : vector<1x8x8xi8> to vector<8x8xi8>
    %c0_i8 = arith.constant 0 : i8
    %14 = vector.broadcast %c0_i8 : i8 to vector<8x8xi8>
    %15 = arith.cmpi ne, %13, %14 : vector<8x8xi8>
    %cst_15 = arith.constant 0xFF800000 : f32
    %16 = vector.broadcast %cst_15 : f32 to vector<8x8xf32>
    %17 = arith.select %15, %16, %11 : vector<8x8xi1>, vector<8x8xf32>
    %cst_16 = arith.constant dense<0xFF800000> : vector<8xf32>
    %18 = vector.multi_reduction <maximumf>, %17, %cst_16 [1] : vector<8x8xf32> to vector<8xf32>
    %19 = vector.shape_cast %18 : vector<8xf32> to vector<8x1xf32>
    %20 = vector.broadcast %19 : vector<8x1xf32> to vector<8x8xf32>
    %21 = arith.subf %17, %20 : vector<8x8xf32>
    %22 = math.exp %21 : vector<8x8xf32>
    %cst_17 = arith.constant dense<0.000000e+00> : vector<8xf32>
    %23 = vector.multi_reduction <add>, %22, %cst_17 [1] : vector<8x8xf32> to vector<8xf32>
    %24 = vector.shape_cast %23 : vector<8xf32> to vector<8x1xf32>
    %25 = tpu.reciprocal %24 {approx = true} : vector<8x1xf32> -> vector<8x1xf32>
    %26 = arith.mulf %24, %25 : vector<8x1xf32>
    %cst_18 = arith.constant 2.000000e+00 : f32
    %27 = vector.broadcast %cst_18 : f32 to vector<8x1xf32>
    %28 = arith.subf %27, %26 : vector<8x1xf32>
    %29 = arith.mulf %25, %28 : vector<8x1xf32>
    %30 = vector.broadcast %29 : vector<8x1xf32> to vector<8x8xf32>
    %31 = arith.mulf %22, %30 : vector<8x8xf32>
    %cst_19 = arith.constant 0.000000e+00 : f32
    %32 = vector.broadcast %cst_19 : f32 to vector<8x8xf32>
    %33 = arith.select %15, %32, %31 : vector<8x8xi1>, vector<8x8xf32>
    %c0_20 = arith.constant 0 : index
    %c0_21 = arith.constant 0 : index
    %c0_22 = arith.constant 0 : index
    %34 = vector.load %arg8[%c0_20, %c0_21, %c0_22] : memref<1x8x8xf32, #tpu.memory_space<vmem>>, vector<1x8x8xf32>
    %35 = vector.shape_cast %34 : vector<1x8x8xf32> to vector<8x8xf32>
    %36 = vector.shape_cast %33 : vector<8x8xf32> to vector<1x8x8xf32>
    tpu.vector_store %arg8[%c0_20, %c0_21, %c0_22], %36 {strides = array<i32>} : memref<1x8x8xf32, #tpu.memory_space<vmem>>, vector<1x8x8xf32>,
    %cst_23 = arith.constant dense<0.000000e+00> : vector<8x16xf32>
    %37 = tpu.matmul %33, %5, %cst_23 {dimension_numbers = #tpu.dot_dimension_numbers<[1], [0], [0], [1], [0, 0, 1, 1], [], []>} : vector<8x8xf32>, vector<8x16xf32>, vector<8x16xf32> -> vector<8x16xf32>
    %c0_24 = arith.constant 0 : index
    %c0_25 = arith.constant 0 : index
    %c0_26 = arith.constant 0 : index
    %38 = vector.load %arg7[%c0_24, %c0_25, %c0_26] : memref<1x8x16xf32, #tpu.memory_space<vmem>>, vector<1x8x16xf32>
    %39 = vector.shape_cast %38 : vector<1x8x16xf32> to vector<8x16xf32>
    %40 = vector.shape_cast %37 : vector<8x16xf32> to vector<1x8x16xf32>
    tpu.vector_store %arg7[%c0_24, %c0_25, %c0_26], %40 {strides = array<i32>} : memref<1x8x16xf32, #tpu.memory_space<vmem>>, vector<1x8x16xf32>,
    return
  }
  func.func @transform_0(%arg0: i32, %arg1: i32) -> (i32, i32, i32) {
    %c0_i32 = arith.constant 0 : i32
    %c0_i32_0 = arith.constant 0 : i32
    return %arg0, %arg1, %c0_i32 : i32, i32, i32
  }
  func.func @transform_1(%arg0: i32, %arg1: i32) -> (i32, i32, i32) {
    %c0_i32 = arith.constant 0 : i32
    %c0_i32_0 = arith.constant 0 : i32
    %c0_i32_1 = arith.constant 0 : i32
    return %arg0, %c0_i32, %c0_i32_0 : i32, i32, i32
  }
  func.func @transform_2(%arg0: i32, %arg1: i32) -> (i32, i32, i32) {
    %c0_i32 = arith.constant 0 : i32
    %c0_i32_0 = arith.constant 0 : i32
    %c0_i32_1 = arith.constant 0 : i32
    return %arg0, %c0_i32, %c0_i32_0 : i32, i32, i32
  }
  func.func @transform_3(%arg0: i32, %arg1: i32) -> (i32, i32, i32) {
    %c0_i32 = arith.constant 0 : i32
    %c0_i32_0 = arith.constant 0 : i32
    return %arg0, %arg1, %c0_i32 : i32, i32, i32
  }
  func.func @transform_4(%arg0: i32, %arg1: i32) -> (i32, i32, i32) {
    %c0_i32 = arith.constant 0 : i32
    %c0_i32_0 = arith.constant 0 : i32
    return %arg0, %arg1, %c0_i32 : i32, i32, i32
  }
  func.func @transform_5(%arg0: i32, %arg1: i32) -> (i32, i32, i32) {
    %c0_i32 = arith.constant 0 : i32
    %c0_i32_0 = arith.constant 0 : i32
    return %arg0, %arg1, %c0_i32 : i32, i32, i32
  }
  func.func @transform_6(%arg0: i32, %arg1: i32) -> (i32, i32, i32) {
    %c0_i32 = arith.constant 0 : i32
    %c0_i32_0 = arith.constant 0 : i32
    return %arg0, %arg1, %c0_i32 : i32, i32, i32
  }
}

</mosaic_0001>

<llo_original>
// kernel: tpu_custom_call.1
$region0: #{tpu_custom_call.1}
  #allocation0 [shape = 'u32[]', space=smem, size = 0x4, offset = 0x4, fixed_abs, tag = 'smem constant byte address 0x4 - core index']
  #allocation1 [shape = 'u32[144,128]{1,0:T(1,128)}', space=vmem, size = 0x12000, scoped, tag = 'internal scratch']
  %s0 = inlined_call_operand.hbm [shape: f32[2,8,16], index: 0, kind: input, shape index: {}]
  %s1 = inlined_call_operand.hbm [shape: f32[2,8,16], index: 1, kind: input, shape index: {}]
  %s2 = inlined_call_operand.hbm [shape: f32[2,8,16], index: 2, kind: input, shape index: {}]
  %s3 = inlined_call_operand.hbm [shape: f32[2,8,8], index: 3, kind: input, shape index: {}]
  %s4 = inlined_call_operand.vmem [shape: s8[2,8,8], index: 4, kind: input, shape index: {}]
  %s5 = inlined_call_operand.hbm [shape: f32[2,8,16], index: 5, kind: output, shape index: {0}]
  %s6 = inlined_call_operand.hbm [shape: f32[2,8,8], index: 6, kind: output, shape index: {1}]
  %7 = xla_tuple %s5, %s6
  %s8 = sld [smem:[#allocation0]]
  $region77: #{tpu_custom_call.1} parent=0
    _
  %s10 = ssub.s32 1, %s8
  %s11 = scalar_select 0, %s10, %s8
  $region1: #{tpu_custom_call.1} parent=0
    #allocation2 [shape = 'u8[8192]{0}', space=vmem, size = 0x2000, scoped, tag = 'input window, operand 0']
    #allocation3 [shape = 's32[2]{0}', space=sflag, size = 0x8, scoped, tag = 'scoped memory for tpu_custom_call.1']
    #allocation4 [shape = 's32[2]{0}', space=sflag, size = 0x8, scoped, tag = 'scoped memory for tpu_custom_call.1']
    #allocation5 [shape = 'u8[8192]{0}', space=vmem, size = 0x2000, scoped, tag = 'input window, operand 1']
    #allocation6 [shape = 's32[2]{0}', space=sflag, size = 0x8, scoped, tag = 'scoped memory for tpu_custom_call.1']
    #allocation7 [shape = 'u8[8192]{0}', space=vmem, size = 0x2000, scoped, tag = 'input window, operand 2']
    #allocation8 [shape = 'u8[8192]{0}', space=vmem, size = 0x2000, scoped, tag = 'input window, operand 3']
    #allocation9 [shape = 's32[2]{0}', space=sflag, size = 0x8, scoped, tag = 'scoped memory for tpu_custom_call.1']
    #allocation10 [shape = 'u8[8192]{0}', space=vmem, size = 0x2000, scoped, tag = 'output window, operand 0']
    #allocation11 [shape = 'u8[8192]{0}', space=vmem, size = 0x2000, scoped, tag = 'output window, operand 1']
    #allocation12 [shape = 's32[2]{0}', space=sflag, size = 0x8, scoped, tag = 'scoped memory for tpu_custom_call.1']
    %12 = vsyncpa [#allocation3], 0
    %s13 = scalar_lea.sflag [#allocation3], 1
    %14 = vsyncpa %s13, 0
    %15 = vsyncpa [#allocation6], 0
    %s16 = scalar_lea.sflag [#allocation6], 1
    %17 = vsyncpa %s16, 0
    %18 = vsyncpa [#allocation9], 0
    %s19 = scalar_lea.sflag [#allocation9], 1
    %20 = vsyncpa %s19, 0
    %21 = vsyncpa [#allocation4], 0
    %s22 = scalar_lea.sflag [#allocation4], 1
    %23 = vsyncpa %s22, 0
    %24 = vsyncpa [#allocation12], 0
    %s25 = scalar_lea.sflag [#allocation12], 1
    %26 = vsyncpa %s25, 0
    loop: start=0, step=1, limit=4
    $region2: #{tpu_custom_call.1} parent=1 // loop_pre_header
      _
    $region3: #{tpu_custom_call.1} parent=1 // loop_header
      %s28 = sphi 0, %s32
      %p29 = scmp.ge.s32.totalorder %s28, 4
      %s35 = sphi 0, %s47
      %s36 = sphi 0, %s43
      %s37 = sphi 0, %s35
      %s38 = sphi 0, %s36
      %s39 = sphi 0, %s37
      %s40 = sphi 0, %s38
      %s52 = sphi 0, %s54
      %s55 = sphi 0, %s52
      %s56 = sphi 0, %s55
      %s72 = sphi 0, %s56
      %s78 = sphi 0, %s80
      %s81 = sphi 0, %s78
      %s82 = sphi 0, %s81
      %s98 = sphi 0, %s82
      %s104 = sphi 0, %s106
      %s107 = sphi 0, %s104
      %s108 = sphi 0, %s107
      %s124 = sphi 0, %s108
      %s132 = sphi 0, %s134
      %s135 = sphi 0, %s132
      %s136 = sphi 0, %s135
      %s152 = sphi 0, %s136
      %s160 = sphi 0, %s162
      %s163 = sphi 0, %s160
      %s164 = sphi 0, %s163
      %s180 = sphi 0, %s164
      %s188 = sphi 0, %s190
      %s191 = sphi 0, %s188
      %s192 = sphi 0, %s191
      %s208 = sphi 0, %s192
      %s216 = sphi 0, %s218
      %s219 = sphi 0, %s216
      %s220 = sphi 0, %s219
      %s236 = sphi 0, %s220
    $region4: #{tpu_custom_call.1} parent=1 // loop_header_branch
      %31 = sbr.rel (%p29) target = $region8
    $region5: #{tpu_custom_call.1} parent=1 // loop_body
      %s33 = ssub.s32 %s28, 1
      %s34 = ssub.s32 %s28, 2
      %s41 = sadd.s32 1, %s36
      %p42 = scmp.ge.s32.totalorder %s41, 1
      %s43 = scalar_select %p42, 0, %s41
      %s44 = sadd.s32 1, %s35
      %s45 = scalar_select %p42, %s44, %s35
      %p46 = scmp.ge.s32.totalorder %s45, 2
      %s47 = scalar_select %p46, 0, %s45
      %s48 = ssub.s32 %s35, %s47
      %s49 = ssub.s32 %s36, %s43
      %s50 = sor.u32 %s48, %s49
      %p51 = scmp.eq.s32.totalorder %s50, 0
      %s53 = sadd.s32 %s52, 1
      %s54 = scalar_select %p51, %s52, %s53
      %p57 = pneg %p51
      %p58 = scmp.eq.s32.totalorder %s28, 1
      %p59 = por %p57, %p58
      %p60 = scmp.ne.s32.totalorder %s52, %s55
      %p61 = scmp.eq.s32.totalorder %s28, 0
      %p62 = por %p60, %p61
      %p63 = scmp.ne.s32.totalorder %s52, %s55
      %p64 = scmp.eq.s32.totalorder %s33, 1
      %p65 = por %p63, %p64
      %p66 = scmp.ne.s32.totalorder %s55, %s56
      %p67 = scmp.eq.s32.totalorder %s33, 0
      %p68 = por %p66, %p67
      %p69 = scmp.ne.s32.totalorder %s55, %s56
      %p70 = scmp.eq.s32.totalorder %s34, 1
      %p71 = por %p69, %p70
      %p73 = scmp.ne.s32.totalorder %s56, %s72
      %p74 = scmp.eq.s32.totalorder %s34, 0
      %p75 = por %p73, %p74
      %s76 = ssub.s32 %s35, %s47
      %p77 = scmp.eq.s32.totalorder %s76, 0
      %s79 = sadd.s32 %s78, 1
      %s80 = scalar_select %p77, %s78, %s79
      %p83 = pneg %p77
      %p84 = scmp.eq.s32.totalorder %s28, 1
      %p85 = por %p83, %p84
      %p86 = scmp.ne.s32.totalorder %s78, %s81
      %p87 = scmp.eq.s32.totalorder %s28, 0
      %p88 = por %p86, %p87
      %p89 = scmp.ne.s32.totalorder %s78, %s81
      %p90 = scmp.eq.s32.totalorder %s33, 1
      %p91 = por %p89, %p90
      %p92 = scmp.ne.s32.totalorder %s81, %s82
      %p93 = scmp.eq.s32.totalorder %s33, 0
      %p94 = por %p92, %p93
      %p95 = scmp.ne.s32.totalorder %s81, %s82
      %p96 = scmp.eq.s32.totalorder %s34, 1
      %p97 = por %p95, %p96
      %p99 = scmp.ne.s32.totalorder %s82, %s98
      %p100 = scmp.eq.s32.totalorder %s34, 0
      %p101 = por %p99, %p100
      %s102 = ssub.s32 %s35, %s47
      %p103 = scmp.eq.s32.totalorder %s102, 0
      %s105 = sadd.s32 %s104, 1
      %s106 = scalar_select %p103, %s104, %s105
      %p109 = pneg %p103
      %p110 = scmp.eq.s32.totalorder %s28, 1
      %p111 = por %p109, %p110
      %p112 = scmp.ne.s32.totalorder %s104, %s107
      %p113 = scmp.eq.s32.totalorder %s28, 0
      %p114 = por %p112, %p113
      %p115 = scmp.ne.s32.totalorder %s104, %s107
      %p116 = scmp.eq.s32.totalorder %s33, 1
      %p117 = por %p115, %p116
      %p118 = scmp.ne.s32.totalorder %s107, %s108
      %p119 = scmp.eq.s32.totalorder %s33, 0
      %p120 = por %p118, %p119
      %p121 = scmp.ne.s32.totalorder %s107, %s108
      %p122 = scmp.eq.s32.totalorder %s34, 1
      %p123 = por %p121, %p122
      %p125 = scmp.ne.s32.totalorder %s108, %s124
      %p126 = scmp.eq.s32.totalorder %s34, 0
      %p127 = por %p125, %p126
      %s128 = ssub.s32 %s35, %s47
      %s129 = ssub.s32 %s36, %s43
      %s130 = sor.u32 %s128, %s129
      %p131 = scmp.eq.s32.totalorder %s130, 0
      %s133 = sadd.s32 %s132, 1
      %s134 = scalar_select %p131, %s132, %s133
      %p137 = pneg %p131
      %p138 = scmp.eq.s32.totalorder %s28, 1
      %p139 = por %p137, %p138
      %p140 = scmp.ne.s32.totalorder %s132, %s135
      %p141 = scmp.eq.s32.totalorder %s28, 0
      %p142 = por %p140, %p141
      %p143 = scmp.ne.s32.totalorder %s132, %s135
      %p144 = scmp.eq.s32.totalorder %s33, 1
      %p145 = por %p143, %p144
      %p146 = scmp.ne.s32.totalorder %s135, %s136
      %p147 = scmp.eq.s32.totalorder %s33, 0
      %p148 = por %p146, %p147
      %p149 = scmp.ne.s32.totalorder %s135, %s136
      %p150 = scmp.eq.s32.totalorder %s34, 1
      %p151 = por %p149, %p150
      %p153 = scmp.ne.s32.totalorder %s136, %s152
      %p154 = scmp.eq.s32.totalorder %s34, 0
      %p155 = por %p153, %p154
      %s156 = ssub.s32 %s35, %s47
      %s157 = ssub.s32 %s36, %s43
      %s158 = sor.u32 %s156, %s157
      %p159 = scmp.eq.s32.totalorder %s158, 0
      %s161 = sadd.s32 %s160, 1
      %s162 = scalar_select %p159, %s160, %s161
      %p165 = pneg %p159
      %p166 = scmp.eq.s32.totalorder %s28, 1
      %p167 = por %p165, %p166
      %p168 = scmp.ne.s32.totalorder %s160, %s163
      %p169 = scmp.eq.s32.totalorder %s28, 0
      %p170 = por %p168, %p169
      %p171 = scmp.ne.s32.totalorder %s160, %s163
      %p172 = scmp.eq.s32.totalorder %s33, 1
      %p173 = por %p171, %p172
      %p174 = scmp.ne.s32.totalorder %s163, %s164
      %p175 = scmp.eq.s32.totalorder %s33, 0
      %p176 = por %p174, %p175
      %p177 = scmp.ne.s32.totalorder %s163, %s164
      %p178 = scmp.eq.s32.totalorder %s34, 1
      %p179 = por %p177, %p178
      %p181 = scmp.ne.s32.totalorder %s164, %s180
      %p182 = scmp.eq.s32.totalorder %s34, 0
      %p183 = por %p181, %p182
      %s184 = ssub.s32 %s35, %s47
      %s185 = ssub.s32 %s36, %s43
      %s186 = sor.u32 %s184, %s185
      %p187 = scmp.eq.s32.totalorder %s186, 0
      %s189 = sadd.s32 %s188, 1
      %s190 = scalar_select %p187, %s188, %s189
      %p193 = pneg %p187
      %p194 = scmp.eq.s32.totalorder %s28, 1
      %p195 = por %p193, %p194
      %p196 = scmp.ne.s32.totalorder %s188, %s191
      %p197 = scmp.eq.s32.totalorder %s28, 0
      %p198 = por %p196, %p197
      %p199 = scmp.ne.s32.totalorder %s188, %s191
      %p200 = scmp.eq.s32.totalorder %s33, 1
      %p201 = por %p199, %p200
      %p202 = scmp.ne.s32.totalorder %s191, %s192
      %p203 = scmp.eq.s32.totalorder %s33, 0
      %p204 = por %p202, %p203
      %p205 = scmp.ne.s32.totalorder %s191, %s192
      %p206 = scmp.eq.s32.totalorder %s34, 1
      %p207 = por %p205, %p206
      %p209 = scmp.ne.s32.totalorder %s192, %s208
      %p210 = scmp.eq.s32.totalorder %s34, 0
      %p211 = por %p209, %p210
      %s212 = ssub.s32 %s35, %s47
      %s213 = ssub.s32 %s36, %s43
      %s214 = sor.u32 %s212, %s213
      %p215 = scmp.eq.s32.totalorder %s214, 0
      %s217 = sadd.s32 %s216, 1
      %s218 = scalar_select %p215, %s216, %s217
      %p221 = pneg %p215
      %p222 = scmp.eq.s32.totalorder %s28, 1
      %p223 = por %p221, %p222
      %p224 = scmp.ne.s32.totalorder %s216, %s219
      %p225 = scmp.eq.s32.totalorder %s28, 0
      %p226 = por %p224, %p225
      %p227 = scmp.ne.s32.totalorder %s216, %s219
      %p228 = scmp.eq.s32.totalorder %s33, 1
      %p229 = por %p227, %p228
      %p230 = scmp.ne.s32.totalorder %s219, %s220
      %p231 = scmp.eq.s32.totalorder %s33, 0
      %p232 = por %p230, %p231
      %p233 = scmp.ne.s32.totalorder %s219, %s220
      %p234 = scmp.eq.s32.totalorder %s34, 1
      %p235 = por %p233, %p234
      %p237 = scmp.ne.s32.totalorder %s220, %s236
      %p238 = scmp.eq.s32.totalorder %s34, 0
      %p239 = por %p237, %p238
      %p240 = scmp.le.s32.totalorder 1, %s28
      %p241 = scmp.lt.s32.totalorder %s28, 3
      %p242 = pnand %p240, %p241
      %p243 = pneg %p242
      // Predicated region
      $region9: #{tpu_custom_call.1} parent=5 // pred_check
        _
      $region10: #{tpu_custom_call.1} parent=5 // pred_check_branch
        %245 = sbr.rel (%p242) target = $region12
      $region11: #{tpu_custom_call.1} parent=5 // pred_region
        %s246 = ssub.s32 %s28, 1
      $region12: #{tpu_custom_call.1} parent=5 // pred_fallthru
        _
      %p247 = scmp.lt.s32.totalorder %s28, 2
      // Predicated region
      $region13: #{tpu_custom_call.1} parent=5 // pred_check
        %p248 = pneg %p247
      $region14: #{tpu_custom_call.1} parent=5 // pred_check_branch
        %250 = sbr.rel (%p248) target = $region16
      $region15: #{tpu_custom_call.1} parent=5 // pred_region
        // Predicated region
        $region17: #{tpu_custom_call.1} parent=15 // pred_check
          %p251 = pneg %p62
        $region18: #{tpu_custom_call.1} parent=15 // pred_check_branch
          %253 = sbr.rel (%p251) target = $region20
        $region19: #{tpu_custom_call.1} parent=15 // pred_region
          %s254 = sand.u32 %s52, 1
          %s255 = scalar_lea.sflag [#allocation3], %s254
          %s256 = sand.u32 %s52, 1
          %s257 = smul.addr %s256, 8
          %s258 = scalar_lea.vmem [#allocation2], %s257
          %s260 = ssub.s32 128, 128
          %261 = vsyncadd %s255, %s260
          %s262 = sadd.s32 %s36, %s35
          %s263 = smul.addr %s262, 128
          %s264 = scalar_lea.hbm %s0, %s263
          %s266 = sshll.u32 %s258, 4
          %s267 = int_to_ptr.vmem [resolvable:$true] %s266
          %269 = dma.hbm_to_vmem [thread:$0]  %s264, 128, %s267, %s255
        $region20: #{tpu_custom_call.1} parent=15 // pred_fallthru
          _
        // Predicated region
        $region21: #{tpu_custom_call.1} parent=15 // pred_check
          %p270 = pneg %p88
        $region22: #{tpu_custom_call.1} parent=15 // pred_check_branch
          %272 = sbr.rel (%p270) target = $region24
        $region23: #{tpu_custom_call.1} parent=15 // pred_region
          %s273 = sand.u32 %s28, 1
          %s274 = scalar_lea.sflag [#allocation6], %s273
          %s275 = sand.u32 %s78, 1
          %s276 = smul.addr %s275, 8
          %s277 = scalar_lea.vmem [#allocation5], %s276
          %s279 = ssub.s32 128, 128
          %280 = vsyncadd %s274, %s279
          %s281 = smul.addr %s35, 128
          %s282 = scalar_lea.hbm %s1, %s281
          %s284 = sshll.u32 %s277, 4
          %s285 = int_to_ptr.vmem [resolvable:$true] %s284
          %287 = dma.hbm_to_vmem [thread:$0]  %s282, 128, %s285, %s274
        $region24: #{tpu_custom_call.1} parent=15 // pred_fallthru
          _
        // Predicated region
        $region25: #{tpu_custom_call.1} parent=15 // pred_check
          %p288 = pneg %p114
        $region26: #{tpu_custom_call.1} parent=15 // pred_check_branch
          %290 = sbr.rel (%p288) target = $region28
        $region27: #{tpu_custom_call.1} parent=15 // pred_region
          %s291 = sand.u32 %s28, 1
          %s292 = scalar_lea.sflag [#allocation6], %s291
          %s293 = sand.u32 %s104, 1
          %s294 = smul.addr %s293, 8
          %s295 = scalar_lea.vmem [#allocation7], %s294
          %s297 = ssub.s32 128, 128
          %298 = vsyncadd %s292, %s297
          %s299 = smul.addr %s35, 128
          %s300 = scalar_lea.hbm %s2, %s299
          %s302 = sshll.u32 %s295, 4
          %s303 = int_to_ptr.vmem [resolvable:$true] %s302
          %305 = dma.hbm_to_vmem [thread:$0]  %s300, 128, %s303, %s292
        $region28: #{tpu_custom_call.1} parent=15 // pred_fallthru
          _
        // Predicated region
        $region29: #{tpu_custom_call.1} parent=15 // pred_check
          %p306 = pneg %p142
        $region30: #{tpu_custom_call.1} parent=15 // pred_check_branch
          %308 = sbr.rel (%p306) target = $region32
        $region31: #{tpu_custom_call.1} parent=15 // pred_region
          %s309 = sand.u32 %s132, 1
          %s310 = scalar_lea.sflag [#allocation9], %s309
          %s311 = sand.u32 %s132, 1
          %s312 = smul.addr %s311, 8
          %s313 = scalar_lea.vmem [#allocation8], %s312
          %s315 = ssub.s32 128, 128
          %316 = vsyncadd %s310, %s315
          %s317 = sadd.s32 %s36, %s35
          %s318 = smul.addr %s317, 128
          %s319 = scalar_lea.hbm %s3, %s318
          %s321 = sshll.u32 %s313, 4
          %s322 = int_to_ptr.vmem [resolvable:$true] %s321
          %324 = dma.hbm_to_vmem [thread:$0]  %s319, 128, %s322, %s310
        $region32: #{tpu_custom_call.1} parent=15 // pred_fallthru
          _
        // Predicated region
        $region33: #{tpu_custom_call.1} parent=15 // pred_check
          %p325 = pneg %p170
        $region34: #{tpu_custom_call.1} parent=15 // pred_check_branch
          %327 = sbr.rel (%p325) target = $region36
        $region35: #{tpu_custom_call.1} parent=15 // pred_region
          %p328 = scmp.lt.s32.totalorder %s35, 1
          %s329 = scalar_select %p328, %s35, 1
          %p330 = scmp.lt.s32.totalorder %s36, 0
          %s331 = scalar_select %p330, %s36, 0
          %s332 = sadd.s32 %s331, %s329
          %s333 = smul.addr %s332, 2
          %s334 = scalar_lea.vmem %s4, %s333
        $region36: #{tpu_custom_call.1} parent=15 // pred_fallthru
          _
      $region16: #{tpu_custom_call.1} parent=5 // pred_fallthru
        _
      %p335 = scmp.le.s32.totalorder 1, %s28
      %p336 = scmp.lt.s32.totalorder %s28, 3
      %p337 = pnand %p335, %p336
      %p338 = pneg %p337
      // Predicated region
      $region37: #{tpu_custom_call.1} parent=5 // pred_check
        _
      $region38: #{tpu_custom_call.1} parent=5 // pred_check_branch
        %340 = sbr.rel (%p337) target = $region40
      $region39: #{tpu_custom_call.1} parent=5 // pred_region
        %s341 = ssub.s32 %s28, 1
        %s342 = sand.u32 %s55, 1
        %s343 = scalar_lea.sflag [#allocation3], %s342
        %s344 = sand.u32 %s55, 1
        %s345 = smul.addr %s344, 8
        %s346 = scalar_lea.vmem [#allocation2], %s345
        // Predicated region
        $region41: #{tpu_custom_call.1} parent=39 // pred_check
          %p347 = pneg %p68
        $region42: #{tpu_custom_call.1} parent=39 // pred_check_branch
          %349 = sbr.rel (%p347) target = $region44
        $region43: #{tpu_custom_call.1} parent=39 // pred_region
          %350 = dma.done %s343, 128
        $region44: #{tpu_custom_call.1} parent=39 // pred_fallthru
          _
        %s351 = sand.u32 %s33, 1
        %s352 = scalar_lea.sflag [#allocation6], %s351
        %s353 = sand.u32 %s81, 1
        %s354 = smul.addr %s353, 8
        %s355 = scalar_lea.vmem [#allocation5], %s354
        // Predicated region
        $region45: #{tpu_custom_call.1} parent=39 // pred_check
          %p356 = pneg %p94
        $region46: #{tpu_custom_call.1} parent=39 // pred_check_branch
          %358 = sbr.rel (%p356) target = $region48
        $region47: #{tpu_custom_call.1} parent=39 // pred_region
          %359 = dma.done %s352, 128
        $region48: #{tpu_custom_call.1} parent=39 // pred_fallthru
          _
        %s360 = sand.u32 %s33, 1
        %s361 = scalar_lea.sflag [#allocation6], %s360
        %s362 = sand.u32 %s107, 1
        %s363 = smul.addr %s362, 8
        %s364 = scalar_lea.vmem [#allocation7], %s363
        // Predicated region
        $region49: #{tpu_custom_call.1} parent=39 // pred_check
          %p365 = pneg %p120
        $region50: #{tpu_custom_call.1} parent=39 // pred_check_branch
          %367 = sbr.rel (%p365) target = $region52
        $region51: #{tpu_custom_call.1} parent=39 // pred_region
          %368 = dma.done %s361, 128
        $region52: #{tpu_custom_call.1} parent=39 // pred_fallthru
          _
        %s369 = sand.u32 %s135, 1
        %s370 = scalar_lea.sflag [#allocation9], %s369
        %s371 = sand.u32 %s135, 1
        %s372 = smul.addr %s371, 8
        %s373 = scalar_lea.vmem [#allocation8], %s372
        // Predicated region
        $region53: #{tpu_custom_call.1} parent=39 // pred_check
          %p374 = pneg %p148
        $region54: #{tpu_custom_call.1} parent=39 // pred_check_branch
          %376 = sbr.rel (%p374) target = $region56
        $region55: #{tpu_custom_call.1} parent=39 // pred_region
          %377 = dma.done %s370, 128
        $region56: #{tpu_custom_call.1} parent=39 // pred_fallthru
          _
        %s378 = sand.u32 %s55, 1
        %s379 = scalar_lea.sflag [#allocation3], %s378
        %s380 = sand.u32 %s55, 1
        %s381 = smul.addr %s380, 8
        %s382 = scalar_lea.vmem [#allocation2], %s381
        %p383 = pneg %p68
        %p384 = pneg %p65
        %s385 = sand.u32 %s33, 1
        %s386 = scalar_lea.sflag [#allocation6], %s385
        %s387 = sand.u32 %s81, 1
        %s388 = smul.addr %s387, 8
        %s389 = scalar_lea.vmem [#allocation5], %s388
        %p390 = pneg %p94
        %p391 = pneg %p91
        %s392 = sand.u32 %s33, 1
        %s393 = scalar_lea.sflag [#allocation6], %s392
        %s394 = sand.u32 %s107, 1
        %s395 = smul.addr %s394, 8
        %s396 = scalar_lea.vmem [#allocation7], %s395
        %p397 = pneg %p120
        %p398 = pneg %p117
        %s399 = sand.u32 %s135, 1
        %s400 = scalar_lea.sflag [#allocation9], %s399
        %s401 = sand.u32 %s135, 1
        %s402 = smul.addr %s401, 8
        %s403 = scalar_lea.vmem [#allocation8], %s402
        %p404 = pneg %p148
        %p405 = pneg %p145
        %p406 = scmp.lt.s32.totalorder %s37, 1
        %s407 = scalar_select %p406, %s37, 1
        %p408 = scmp.lt.s32.totalorder %s38, 0
        %s409 = scalar_select %p408, %s38, 0
        %s410 = sadd.s32 %s409, %s407
        %s411 = smul.addr %s410, 2
        %s412 = scalar_lea.vmem %s4, %s411
        %p413 = pneg %p176
        %p414 = pneg %p173
        %p415 = pneg %p204
        %p416 = pneg %p201
        %s417 = sand.u32 %s191, 1
        %s418 = scalar_lea.sflag [#allocation4], %s417
        %s419 = sand.u32 %s191, 1
        %s420 = smul.addr %s419, 8
        %s421 = scalar_lea.vmem [#allocation10], %s420
        %p422 = pneg %p232
        %p423 = pneg %p229
        %s424 = sand.u32 %s219, 1
        %s425 = scalar_lea.sflag [#allocation12], %s424
        %s426 = sand.u32 %s219, 1
        %s427 = smul.addr %s426, 8
        %s428 = scalar_lea.vmem [#allocation11], %s427
        %p429 = scmp.lt.s32.totalorder %s37, 1
        %s430 = scalar_select %p429, %s37, 1
        %p431 = scmp.lt.s32.totalorder %s38, 0
        %s432 = scalar_select %p431, %s38, 0
        %s433 = sadd.s32 %s432, %s430
        %s434 = smul.addr %s433, 2
        %s435 = scalar_lea.vmem %s4, %s434
        %v438 = vld [vmem:[%s346] sm:$0xff]
        %v439 = vld [vmem:[%s355] sm:$0xff]
        %v440 = vld [vmem:[%s364] sm:$0xff]
        %v441 = vld [vmem:[%s373] sm:$0xff]
        %vm442 = vcmask 130048
        %v444 = vsel %vm442, %v438, 0
        %v447 = vsel %vm442, %v439, 0
        %449 = vmatprep.subr.mxu0 0.0
        %450 = vmatpush1.xpose.msra.mxu0 %v447
        %451 = vmatprep.subr.mxu0 0.0
        %452 = vmatpush1.xpose.msra.mxu0 0.0
        %453 = vmatprep.subr.mxu0 0.0
        %454 = vmatpush1.xpose.msra.mxu0 0.0
        %455 = vmatprep.subr.mxu0 0.0
        %456 = vmatpush1.xpose.msra.mxu0 0.0
        %457 = vmatprep.subr.mxu0 0.0
        %458 = vmatpush1.xpose.msra.mxu0 0.0
        %459 = vmatprep.subr.mxu0 0.0
        %460 = vmatpush1.xpose.msra.mxu0 0.0
        %461 = vmatprep.subr.mxu0 0.0
        %462 = vmatpush1.xpose.msra.mxu0 0.0
        %463 = vmatprep.subr.mxu0 0.0
        %464 = vmatpush1.xpose.msra.mxu0 0.0
        %465 = vmatprep.subr.mxu0 0.0
        %466 = vmatpush1.xpose.msra.mxu0 0.0
        %467 = vmatprep.subr.mxu0 0.0
        %468 = vmatpush1.xpose.msra.mxu0 0.0
        %469 = vmatprep.subr.mxu0 0.0
        %470 = vmatpush1.xpose.msra.mxu0 0.0
        %471 = vmatprep.subr.mxu0 0.0
        %472 = vmatpush1.xpose.msra.mxu0 0.0
        %473 = vmatprep.subr.mxu0 0.0
        %474 = vmatpush1.xpose.msra.mxu0 0.0
        %475 = vmatprep.subr.mxu0 0.0
        %476 = vmatpush1.xpose.msra.mxu0 0.0
        %477 = vmatprep.subr.mxu0 0.0
        %478 = vmatpush1.xpose.msra.mxu0 0.0
        %479 = vmatprep.subr.mxu0 0.0
        %480 = vmatpush1.xpose.msra.mxu0 0.0
        %481 = vmatprep.subr.mxu0 0.0
        %482 = vmatpush1.xpose.msra.mxu0 0.0
        %483 = vmatprep.subr.mxu0 0.0
        %484 = vmatpush1.xpose.msra.mxu0 0.0
        %485 = vmatprep.subr.mxu0 0.0
        %486 = vmatpush1.xpose.msra.mxu0 0.0
        %487 = vmatprep.subr.mxu0 0.0
        %488 = vmatpush1.xpose.msra.mxu0 0.0
        %489 = vmatprep.subr.mxu0 0.0
        %490 = vmatpush1.xpose.msra.mxu0 0.0
        %491 = vmatprep.subr.mxu0 0.0
        %492 = vmatpush1.xpose.msra.mxu0 0.0
        %493 = vmatprep.subr.mxu0 0.0
        %494 = vmatpush1.xpose.msra.mxu0 0.0
        %495 = vmatprep.subr.mxu0 0.0
        %496 = vmatpush1.xpose.msra.mxu0 0.0
        %497 = vmatprep.subr.mxu0 0.0
        %498 = vmatpush1.xpose.msra.mxu0 0.0
        %499 = vmatprep.subr.mxu0 0.0
        %500 = vmatpush1.xpose.msra.mxu0 0.0
        %501 = vmatprep.subr.mxu0 0.0
        %502 = vmatpush1.xpose.msra.mxu0 0.0
        %503 = vmatprep.subr.mxu0 0.0
        %504 = vmatpush1.xpose.msra.mxu0 0.0
        %505 = vmatprep.subr.mxu0 0.0
        %506 = vmatpush1.xpose.msra.mxu0 0.0
        %507 = vmatprep.subr.mxu0 0.0
        %508 = vmatpush1.xpose.msra.mxu0 0.0
        %509 = vmatprep.subr.mxu0 0.0
        %510 = vmatpush1.xpose.msra.mxu0 0.0
        %511 = vmatprep.subr.mxu0 0.0
        %512 = vmatpush1.xpose.msra.mxu0 0.0
        %513 = vmatprep.mubr.f32.mxu0 0.0
        %514 = vmatmul.mubr.f32.gmra.mrb[0].mxu0 %v444
        %v515 = vpop.f32.mrb[0].mxu0
        %v516 = vadd.f32 %v441, %v515
        %v517 = vpop.f32.mrb[0].mxu0
        %518 = vdwg.mxu0
        %v519 = vmul.f32 %v516, 0.25
        %v520 = vld [vmem:[%s435] sm:$0x3]
        %vm521 = vnez %v520
        %v522 = vsel %vm521, 16843009, 0
        %v523 = vunpack.c.0.s8 %v522
        %vm524 = vcmp.ne.s32.totalorder %v523, 0
        %v525 = vsel %vm524, -inf, %v519
        %vm526 = vcmask 64512
        %v527 = vsel %vm526, %v525, -inf
        %528 = vmax.xlane.f32.xlu0 %v527
        %v529 = vpop.xlane.xlu0 %528
        %v530 = vsub.f32 %v525, %v529
        %v531 = vmul.f32 %v530, 1.442695
        %v532 = vpow.pop %v531
        %v533 = vsel %vm526, %v532, 0.0
        %534 = vadd.xlane.f32.xlu0 %v533
        %v535 = vpop.xlane.xlu0 %534
        %v536 = vrcp.pop %v535
        %v537 = vmul.f32 %v535, %v536
        %v538 = vsub.f32 2.0, %v537
        %v539 = vmul.f32 %v536, %v538
        %v540 = vmul.f32 %v532, %v539
        %v541 = vsel %vm524, 0.0, %v540
        %542 = vst.msk [vmem:[%s428] sm:$0xff] %vm526, %v541
        %v544 = vsel %vm526, %v541, 0
        %546 = vmatprep.subr.mxu0 0.0
        %547 = vmatpush1.msra.mxu0 %v440
        %548 = vmatprep.subr.mxu0 0.0
        %549 = vmatpush1.msra.mxu0 0.0
        %550 = vmatprep.subr.mxu0 0.0
        %551 = vmatpush1.msra.mxu0 0.0
        %552 = vmatprep.subr.mxu0 0.0
        %553 = vmatpush1.msra.mxu0 0.0
        %554 = vmatprep.subr.mxu0 0.0
        %555 = vmatpush1.msra.mxu0 0.0
        %556 = vmatprep.subr.mxu0 0.0
        %557 = vmatpush1.msra.mxu0 0.0
        %558 = vmatprep.subr.mxu0 0.0
        %559 = vmatpush1.msra.mxu0 0.0
        %560 = vmatprep.subr.mxu0 0.0
        %561 = vmatpush1.msra.mxu0 0.0
        %562 = vmatprep.subr.mxu0 0.0
        %563 = vmatpush1.msra.mxu0 0.0
        %564 = vmatprep.subr.mxu0 0.0
        %565 = vmatpush1.msra.mxu0 0.0
        %566 = vmatprep.subr.mxu0 0.0
        %567 = vmatpush1.msra.mxu0 0.0
        %568 = vmatprep.subr.mxu0 0.0
        %569 = vmatpush1.msra.mxu0 0.0
        %570 = vmatprep.subr.mxu0 0.0
        %571 = vmatpush1.msra.mxu0 0.0
        %572 = vmatprep.subr.mxu0 0.0
        %573 = vmatpush1.msra.mxu0 0.0
        %574 = vmatprep.subr.mxu0 0.0
        %575 = vmatpush1.msra.mxu0 0.0
        %576 = vmatprep.subr.mxu0 0.0
        %577 = vmatpush1.msra.mxu0 0.0
        %578 = vmatprep.subr.mxu0 0.0
        %579 = vmatpush1.msra.mxu0 0.0
        %580 = vmatprep.subr.mxu0 0.0
        %581 = vmatpush1.msra.mxu0 0.0
        %582 = vmatprep.subr.mxu0 0.0
        %583 = vmatpush1.msra.mxu0 0.0
        %584 = vmatprep.subr.mxu0 0.0
        %585 = vmatpush1.msra.mxu0 0.0
        %586 = vmatprep.subr.mxu0 0.0
        %587 = vmatpush1.msra.mxu0 0.0
        %588 = vmatprep.subr.mxu0 0.0
        %589 = vmatpush1.msra.mxu0 0.0
        %590 = vmatprep.subr.mxu0 0.0
        %591 = vmatpush1.msra.mxu0 0.0
        %592 = vmatprep.subr.mxu0 0.0
        %593 = vmatpush1.msra.mxu0 0.0
        %594 = vmatprep.subr.mxu0 0.0
        %595 = vmatpush1.msra.mxu0 0.0
        %596 = vmatprep.subr.mxu0 0.0
        %597 = vmatpush1.msra.mxu0 0.0
        %598 = vmatprep.subr.mxu0 0.0
        %599 = vmatpush1.msra.mxu0 0.0
        %600 = vmatprep.subr.mxu0 0.0
        %601 = vmatpush1.msra.mxu0 0.0
        %602 = vmatprep.subr.mxu0 0.0
        %603 = vmatpush1.msra.mxu0 0.0
        %604 = vmatprep.subr.mxu0 0.0
        %605 = vmatpush1.msra.mxu0 0.0
        %606 = vmatprep.subr.mxu0 0.0
        %607 = vmatpush1.msra.mxu0 0.0
        %608 = vmatprep.subr.mxu0 0.0
        %609 = vmatpush1.msra.mxu0 0.0
        %610 = vmatprep.mubr.f32.mxu0 0.0
        %611 = vmatmul.mubr.f32.gmra.mrb[0].mxu0 %v544
        %v612 = vpop.f32.mrb[0].mxu0
        %v613 = vadd.f32 0.0, %v612
        %v614 = vpop.f32.mrb[0].mxu0
        %615 = vdwg.mxu0
        %616 = vst.msk [vmem:[%s421] sm:$0xff] %vm442, %v613
        %s617 = sand.u32 %s191, 1
        %s618 = scalar_lea.sflag [#allocation4], %s617
        %s619 = sand.u32 %s191, 1
        %s620 = smul.addr %s619, 8
        %s621 = scalar_lea.vmem [#allocation10], %s620
        %s622 = sand.u32 %s219, 1
        %s623 = scalar_lea.sflag [#allocation12], %s622
        %s624 = sand.u32 %s219, 1
        %s625 = smul.addr %s624, 8
        %s626 = scalar_lea.vmem [#allocation11], %s625
        // Predicated region
        $region57: #{tpu_custom_call.1} parent=39 // pred_check
          %p627 = pneg %p201
        $region58: #{tpu_custom_call.1} parent=39 // pred_check_branch
          %629 = sbr.rel (%p627) target = $region60
        $region59: #{tpu_custom_call.1} parent=39 // pred_region
          %s631 = ssub.s32 128, 128
          %632 = vsyncadd %s618, %s631
          %s633 = sadd.s32 %s38, %s37
          %s634 = smul.addr %s633, 128
          %s635 = scalar_lea.hbm %s5, %s634
          %s637 = sshll.u32 %s621, 4
          %s638 = int_to_ptr.vmem [resolvable:$true] %s637
          %640 = dma.vmem_to_hbm [thread:$0]  %s638, 128, %s635, %s618
        $region60: #{tpu_custom_call.1} parent=39 // pred_fallthru
          _
        // Predicated region
        $region61: #{tpu_custom_call.1} parent=39 // pred_check
          %p641 = pneg %p229
        $region62: #{tpu_custom_call.1} parent=39 // pred_check_branch
          %643 = sbr.rel (%p641) target = $region64
        $region63: #{tpu_custom_call.1} parent=39 // pred_region
          %s645 = ssub.s32 128, 128
          %646 = vsyncadd %s623, %s645
          %s647 = sadd.s32 %s38, %s37
          %s648 = smul.addr %s647, 128
          %s649 = scalar_lea.hbm %s6, %s648
          %s651 = sshll.u32 %s626, 4
          %s652 = int_to_ptr.vmem [resolvable:$true] %s651
          %654 = dma.vmem_to_hbm [thread:$0]  %s652, 128, %s649, %s623
        $region64: #{tpu_custom_call.1} parent=39 // pred_fallthru
          _
      $region40: #{tpu_custom_call.1} parent=5 // pred_fallthru
        _
      %p655 = scmp.le.s32.totalorder 2, %s28
      // Predicated region
      $region65: #{tpu_custom_call.1} parent=5 // pred_check
        %p656 = pneg %p655
      $region66: #{tpu_custom_call.1} parent=5 // pred_check_branch
        %658 = sbr.rel (%p656) target = $region68
      $region67: #{tpu_custom_call.1} parent=5 // pred_region
        %s659 = ssub.s32 %s28, 2
        // Predicated region
        $region69: #{tpu_custom_call.1} parent=67 // pred_check
          %p660 = pneg %p207
        $region70: #{tpu_custom_call.1} parent=67 // pred_check_branch
          %662 = sbr.rel (%p660) target = $region72
        $region71: #{tpu_custom_call.1} parent=67 // pred_region
          %s663 = sand.u32 %s192, 1
          %s664 = scalar_lea.sflag [#allocation4], %s663
          %s665 = sand.u32 %s192, 1
          %s666 = smul.addr %s665, 8
          %s667 = scalar_lea.vmem [#allocation10], %s666
          %668 = dma.done %s664, 128
        $region72: #{tpu_custom_call.1} parent=67 // pred_fallthru
          _
        // Predicated region
        $region73: #{tpu_custom_call.1} parent=67 // pred_check
          %p669 = pneg %p235
        $region74: #{tpu_custom_call.1} parent=67 // pred_check_branch
          %671 = sbr.rel (%p669) target = $region76
        $region75: #{tpu_custom_call.1} parent=67 // pred_region
          %s672 = sand.u32 %s220, 1
          %s673 = scalar_lea.sflag [#allocation12], %s672
          %s674 = sand.u32 %s220, 1
          %s675 = smul.addr %s674, 8
          %s676 = scalar_lea.vmem [#allocation11], %s675
          %677 = dma.done %s673, 128
        $region76: #{tpu_custom_call.1} parent=67 // pred_fallthru
          _
      $region68: #{tpu_custom_call.1} parent=5 // pred_fallthru
        _
    $region6: #{tpu_custom_call.1} parent=1 // loop_footer
      %s32 = sadd.s32 1, %s28
    $region7: #{tpu_custom_call.1} parent=1 // loop_footer_branch
      %27 = sbr.rel target = $region3
    $region8: #{tpu_custom_call.1} parent=1 // loop_exit
      _
    %678 = vsyncpa [#allocation3], 1
    %s679 = scalar_lea.sflag [#allocation3], 1
    %680 = vsyncpa %s679, 1
    %681 = vsyncpa [#allocation6], 1
    %s682 = scalar_lea.sflag [#allocation6], 1
    %683 = vsyncpa %s682, 1
    %684 = vsyncpa [#allocation9], 1
    %s685 = scalar_lea.sflag [#allocation9], 1
    %686 = vsyncpa %s685, 1
    %687 = vsyncpa [#allocation4], 1
    %s688 = scalar_lea.sflag [#allocation4], 1
    %689 = vsyncpa %s688, 1
    %690 = vsyncpa [#allocation12], 1
    %s691 = scalar_lea.sflag [#allocation12], 1
    %692 = vsyncpa %s691, 1

</llo_original>
